<compile_context>
chip_gen: v7x
topology: tpu7x:2x2x1
jax: 0.10.0
libtpu: 0.0.40
codegen_flags: <defaults>
</compile_context>

<pallas_src>
import jax
import jax.numpy as jnp
from jax import lax
from jax.experimental import pallas as pl
from jax.experimental.pallas import tpu as pltpu


def _round_up(x, m):
    return (x + m - 1) // m * m


def _self_attn_kernel(alpha_ref, xqt_ref, km_ref, vext_ref, xres_ref, o_ref):
    """One (batch, q-tile) grid step.

    alpha_ref : SMEM (1,) f32
    xqt_ref   : (1, tq, c_pad)          bf16  -- x_aug^T query slab (this tile)
    km_ref    : (1, c_pad, hw_pad)      bf16  -- M @ x_aug (key-pad mask folded
                                                 into the bias row)
    vext_ref  : (1, c_out_pad+1, hw_pad) bf16 -- [V ; zero rows ; ones row]
    xres_ref  : (1, c, tq)              f32   -- original x for the residual
    o_ref     : (1, c, tq)              f32
    """
    # scores[i, j] = q_i . k_j ; padded key columns get -1e30 via KM's bias row.
    scores = lax.dot_general(xqt_ref[0], km_ref[0], (((1,), (0,)), ((), ())),
                             preferred_element_type=jnp.float32)     # (tq, hw_pad)

    # Unnormalized softmax numerator (f32 exp on the EUP; normalize after PV).
    m = jnp.max(scores, axis=-1, keepdims=True)
    p = jnp.exp(scores - m).astype(jnp.bfloat16)                     # (tq, hw_pad)

    # out_ext[r, i] = sum_j V_ext[r, j] * p[i, j]  (same pattern as flash q@k^T).
    # The last row of V_ext is all ones, so out_ext[-1, :] is the softmax
    # row-sum, produced by the MXU and already lane-major (no relayout needed).
    out_ext = lax.dot_general(vext_ref[0], p, (((1,), (1,)), ((), ())),
                              preferred_element_type=jnp.float32)    # (c_out_pad+1, tq)

    c = o_ref.shape[1]
    srow = vext_ref.shape[1] - 1
    inv = pl.reciprocal(out_ext[srow:srow + 1, :], approx=True)      # (1, tq)
    o_ref[0] = alpha_ref[0] * (out_ext[:c, :] * inv) + xres_ref[0]


def self_attention_pallas(x_nchw, wq, bq, wk, bk, wv, bv, alpha, *, tq_max=256):
    bs, c, h, w = x_nchw.shape
    hw = h * w
    hw_pad = _round_up(hw, 128)

    # Query tile: lane-dense output, capped so the f32 (tq, hw_pad) softmax slab
    # stays inside the per-generation VMEM budget (v5e 16 MiB default / v7x 64 MiB).
    tq = min(tq_max, hw_pad)
    if hw_pad >= 4096:
        tq = min(tq, 128)
    while hw_pad % tq:
        tq -= 128

    c_aug = c + 1                       # extra "ones" row folds the conv biases
    c_pad = _round_up(c_aug, 16)        # bf16 packs 16 rows per sublane group
    c_out_pad = _round_up(c, 8)         # keeps the ones row vreg-aligned
    v_rows = c_out_pad + 1

    x_flat = x_nchw.reshape(bs, c, hw).astype(jnp.float32)
    x_res = jnp.pad(x_flat, ((0, 0), (0, 0), (0, hw_pad - hw)))

    ones = jnp.ones((bs, 1, hw), jnp.float32)
    x_aug = jnp.concatenate([x_flat, ones], axis=1)
    x_aug = jnp.pad(x_aug, ((0, 0), (0, c_pad - c_aug), (0, hw_pad - hw)))

    def aug_w(wm, bvec):
        wa = jnp.concatenate(
            [wm.astype(jnp.float32), bvec.astype(jnp.float32)[:, None]], axis=1)
        return jnp.pad(wa, ((0, 0), (0, c_pad - c_aug)))

    wq_aug = aug_w(wq, bq)                               # (c8, c_pad)
    wk_aug = aug_w(wk, bk)                               # (c8, c_pad)
    m_aug = wq_aug.T @ wk_aug                            # (c_pad, c_pad) f32

    # Hoisted per-batch precompute (tiny XLA matmuls in f32, cast to bf16).
    km = jnp.einsum("de,bes->bds", m_aug, x_aug)         # (bs, c_pad, hw_pad)
    if hw_pad != hw:
        # Fold the padded-key mask into the bias row (it multiplies the ones
        # entry of every valid query).  Padded columns of KM are zero already,
        # so .set is equivalent to adding the mask.
        km = km.at[:, c_aug - 1, hw:].set(jnp.float32(-1e30))
    km = km.astype(jnp.bfloat16)

    wv_aug = aug_w(wv, bv)                               # (c, c_pad) f32
    v = jnp.einsum("oe,bes->bos", wv_aug, x_aug)         # (bs, c, hw_pad)
    v = jnp.pad(v, ((0, 0), (0, c_out_pad - c), (0, 0)))
    v_ext = jnp.concatenate(
        [v, jnp.ones((bs, 1, hw_pad), jnp.float32)], axis=1).astype(jnp.bfloat16)

    x_aug_t = jnp.transpose(x_aug, (0, 2, 1)).astype(jnp.bfloat16)  # (bs, hw_pad, c_pad)

    alpha_s = jnp.asarray(alpha, jnp.float32).reshape(1)

    # Explicit VMEM budget: double-buffered blocks + per-tile f32 softmax slab.
    blk_bytes = 2 * (tq * c_pad * 2 + c_pad * hw_pad * 2 + v_rows * hw_pad * 2
                     + c * tq * 4 + c * tq * 4)
    tmp_bytes = 3 * tq * hw_pad * 4 + 2 * v_rows * tq * 4
    vmem_limit = min(max(int(1.25 * (blk_bytes + tmp_bytes)) + (2 << 20),
                         32 * 1024 * 1024), 64 * 1024 * 1024)

    cost = pl.CostEstimate(
        flops=2 * bs * hw_pad * hw_pad * (c_pad + v_rows),
        transcendentals=bs * hw_pad * hw_pad,
        bytes_accessed=bs * hw_pad * (2 * c_pad * 2 + v_rows * 2 + 2 * c * 4),
    )

    out_flat = pl.pallas_call(
        _self_attn_kernel,
        out_shape=jax.ShapeDtypeStruct((bs, c, hw_pad), jnp.float32),
        grid=(bs, hw_pad // tq),
        in_specs=[
            pl.BlockSpec(memory_space=pltpu.MemorySpace.SMEM),           # alpha
            pl.BlockSpec((1, tq, c_pad),      lambda b, q: (b, q, 0)),   # x_aug^T q-tile
            pl.BlockSpec((1, c_pad, hw_pad),  lambda b, q: (b, 0, 0)),   # KM (per batch)
            pl.BlockSpec((1, v_rows, hw_pad), lambda b, q: (b, 0, 0)),   # V_ext (per batch)
            pl.BlockSpec((1, c, tq),          lambda b, q: (b, 0, q)),   # x residual (f32)
        ],
        out_specs=pl.BlockSpec((1, c, tq), lambda b, q: (b, 0, q)),
        compiler_params=pltpu.CompilerParams(
            dimension_semantics=("parallel", "parallel"),
            vmem_limit_bytes=vmem_limit),
        cost_estimate=cost,
    )(alpha_s, x_aug_t, km, v_ext, x_res)

    return out_flat[:, :, :hw].reshape(bs, c, h, w)


def self_attention_ref(x_nchw, wq, bq, wk, bk, wv, bv, alpha):
    """Pure-JAX f32 reference (same semantics) for validation."""
    bs, c, h, w = x_nchw.shape
    hw = h * w
    x = x_nchw.reshape(bs, c, hw)
    q = jnp.einsum("oc,bcs->bos", wq, x) + bq[None, :, None]       # (bs, c8, hw)
    k = jnp.einsum("oc,bcs->bos", wk, x) + bk[None, :, None]       # (bs, c8, hw)
    v = jnp.einsum("oc,bcs->bos", wv, x) + bv[None, :, None]       # (bs, c,  hw)
    scores = jnp.einsum("bcq,bck->bqk", q, k)                      # (bs, hw, hw)
    attn = jax.nn.softmax(scores, axis=-1)
    out = jnp.einsum("bcs,bqs->bcq", v, attn)                      # (bs, c, hw)
    return (alpha * out + x).reshape(bs, c, h, w)


if __name__ == "__main__":
    key = jax.random.PRNGKey(0)
    bs, c, h, w = 2, 16, 8, 8
    c8 = c // 8

    k0, k1, k2, k3, k4, k5, k6 = jax.random.split(key, 7)
    x = jax.random.normal(k0, (bs, c, h, w), jnp.float32)

    # Deterministic parameter init (1x1 conv weights squeezed to 2-D matrices).
    wq = jax.random.normal(k1, (c8, c), jnp.float32) * 0.1
    bq = jax.random.normal(k2, (c8,), jnp.float32) * 0.1
    wk = jax.random.normal(k3, (c8, c), jnp.float32) * 0.1
    bk = jax.random.normal(k4, (c8,), jnp.float32) * 0.1
    wv = jax.random.normal(k5, (c, c), jnp.float32) * 0.1
    bv = jax.random.normal(k6, (c,), jnp.float32) * 0.1
    alpha = jnp.zeros((1,), jnp.float32)  # module initializes alpha to zeros

    # Module init (alpha = 0): output must equal x exactly (residual kept in f32).
    y = self_attention_pallas(x, wq, bq, wk, bk, wv, bv, alpha)
    jax.block_until_ready(y)

    # Correctness check with a nonzero alpha so the attention path matters.
    # (bf16 MXU operands => compare against the f32 reference with a loose tol.)
    alpha_test = jnp.array([0.7], jnp.float32)
    y_k = self_attention_pallas(x, wq, bq, wk, bk, wv, bv, alpha_test)
    y_r = self_attention_ref(x, wq, bq, wk, bk, wv, bv, alpha_test)
    jax.block_until_ready((y_k, y_r))
    assert jnp.allclose(y_k, y_r, atol=2e-2, rtol=2e-2), "mismatch vs reference"
    assert jnp.allclose(y, x, atol=1e-6), "alpha=0 should return x"

    print("KERNEL_OK")
</pallas_src>

<mosaic_0001>
module attributes {stable_mosaic.version = 11 : i64} {
  func.func @_self_attn_kernel(%arg0: i32, %arg1: i32, %arg2: memref<1xf32, #tpu.memory_space<smem>>, %arg3: memref<1x128x32xbf16, #tpu.memory_space<vmem>>, %arg4: memref<1x32x128xbf16, #tpu.memory_space<vmem>>, %arg5: memref<1x17x128xbf16, #tpu.memory_space<vmem>>, %arg6: memref<1x16x128xf32, #tpu.memory_space<vmem>>, %arg7: memref<1x16x128xf32, #tpu.memory_space<vmem>>) attributes {dimension_semantics = [#tpu.dimension_semantics<parallel>, #tpu.dimension_semantics<parallel>], iteration_bounds = array<i64: 2, 1>, scalar_prefetch = 0 : i64, scratch_operands = 0 : i64, tpu.core_type = #tpu.core_type<tc>, window_params = [{transform_indices = @transform_0, window_bounds = array<i64: 1>}, {transform_indices = @transform_1, window_bounds = array<i64: 1, 128, 32>}, {transform_indices = @transform_2, window_bounds = array<i64: 1, 32, 128>}, {transform_indices = @transform_3, window_bounds = array<i64: 1, 17, 128>}, {transform_indices = @transform_4, window_bounds = array<i64: 1, 16, 128>}, {transform_indices = @transform_5, window_bounds = array<i64: 1, 16, 128>}]} {
    %c0 = arith.constant 0 : index
    %c0_0 = arith.constant 0 : index
    %c0_1 = arith.constant 0 : index
    %0 = vector.load %arg3[%c0, %c0_0, %c0_1] : memref<1x128x32xbf16, #tpu.memory_space<vmem>>, vector<1x128x32xbf16>
    %1 = vector.shape_cast %0 : vector<1x128x32xbf16> to vector<128x32xbf16>
    %c0_2 = arith.constant 0 : index
    %c0_3 = arith.constant 0 : index
    %c0_4 = arith.constant 0 : index
    %2 = vector.load %arg4[%c0_2, %c0_3, %c0_4] : memref<1x32x128xbf16, #tpu.memory_space<vmem>>, vector<1x32x128xbf16>
    %3 = vector.shape_cast %2 : vector<1x32x128xbf16> to vector<32x128xbf16>
    %cst = arith.constant dense<0.000000e+00> : vector<128x128xf32>
    %4 = tpu.matmul %1, %3, %cst {dimension_numbers = #tpu.dot_dimension_numbers<[1], [0], [0], [1], [0, 0, 1, 1], [], []>} : vector<128x32xbf16>, vector<32x128xbf16>, vector<128x128xf32> -> vector<128x128xf32>
    %cst_5 = arith.constant dense<0xFF800000> : vector<128xf32>
    %5 = vector.multi_reduction <maximumf>, %4, %cst_5 [1] : vector<128x128xf32> to vector<128xf32>
    %6 = vector.shape_cast %5 : vector<128xf32> to vector<128x1xf32>
    %7 = vector.broadcast %6 : vector<128x1xf32> to vector<128x128xf32>
    %8 = arith.subf %4, %7 : vector<128x128xf32>
    %9 = math.exp %8 : vector<128x128xf32>
    %10 = arith.truncf %9 : vector<128x128xf32> to vector<128x128xbf16>
    %c0_6 = arith.constant 0 : index
    %c0_7 = arith.constant 0 : index
    %c0_8 = arith.constant 0 : index
    %11 = vector.load %arg5[%c0_6, %c0_7, %c0_8] : memref<1x17x128xbf16, #tpu.memory_space<vmem>>, vector<1x17x128xbf16>
    %12 = vector.shape_cast %11 : vector<1x17x128xbf16> to vector<17x128xbf16>
    %cst_9 = arith.constant dense<0.000000e+00> : vector<17x128xf32>
    %13 = tpu.matmul %12, %10, %cst_9 {dimension_numbers = #tpu.dot_dimension_numbers<[1], [1], [0], [0], [0, 0, 1, 0], [], []>} : vector<17x128xbf16>, vector<128x128xbf16>, vector<17x128xf32> -> vector<17x128xf32>
    %14 = vector.extract_strided_slice %13 {offsets = [16, 0], sizes = [1, 128], strides = [1, 1]} : vector<17x128xf32> to vector<1x128xf32>
    %15 = tpu.reciprocal %14 {approx = true} : vector<1x128xf32> -> vector<1x128xf32>
    %c0_10 = arith.constant 0 : index
    %16 = memref.load %arg2[%c0_10] : memref<1xf32, #tpu.memory_space<smem>>
    %17 = vector.extract_strided_slice %13 {offsets = [0, 0], sizes = [16, 128], strides = [1, 1]} : vector<17x128xf32> to vector<16x128xf32>
    %18 = vector.broadcast %15 : vector<1x128xf32> to vector<16x128xf32>
    %19 = arith.mulf %17, %18 : vector<16x128xf32>
    %20 = vector.broadcast %16 : f32 to vector<16x128xf32>
    %21 = arith.mulf %20, %19 : vector<16x128xf32>
    %c0_11 = arith.constant 0 : index
    %c0_12 = arith.constant 0 : index
    %c0_13 = arith.constant 0 : index
    %22 = vector.load %arg6[%c0_11, %c0_12, %c0_13] : memref<1x16x128xf32, #tpu.memory_space<vmem>>, vector<1x16x128xf32>
    %23 = vector.shape_cast %22 : vector<1x16x128xf32> to vector<16x128xf32>
    %24 = arith.addf %21, %23 : vector<16x128xf32>
    %c0_14 = arith.constant 0 : index
    %c0_15 = arith.constant 0 : index
    %c0_16 = arith.constant 0 : index
    %25 = vector.load %arg7[%c0_14, %c0_15, %c0_16] : memref<1x16x128xf32, #tpu.memory_space<vmem>>, vector<1x16x128xf32>
    %26 = vector.shape_cast %25 : vector<1x16x128xf32> to vector<16x128xf32>
    %27 = vector.shape_cast %24 : vector<16x128xf32> to vector<1x16x128xf32>
    tpu.vector_store %arg7[%c0_14, %c0_15, %c0_16], %27 {strides = array<i32>} : memref<1x16x128xf32, #tpu.memory_space<vmem>>, vector<1x16x128xf32>,
    return
  }
  func.func @transform_0(%arg0: i32, %arg1: i32) -> i32 {
    %c0_i32 = arith.constant 0 : i32
    %c0_i32_0 = arith.constant 0 : i32
    return %c0_i32 : i32
  }
  func.func @transform_1(%arg0: i32, %arg1: i32) -> (i32, i32, i32) {
    %c0_i32 = arith.constant 0 : i32
    %c0_i32_0 = arith.constant 0 : i32
    return %arg0, %arg1, %c0_i32 : i32, i32, i32
  }
  func.func @transform_2(%arg0: i32, %arg1: i32) -> (i32, i32, i32) {
    %c0_i32 = arith.constant 0 : i32
    %c0_i32_0 = arith.constant 0 : i32
    %c0_i32_1 = arith.constant 0 : i32
    return %arg0, %c0_i32, %c0_i32_0 : i32, i32, i32
  }
  func.func @transform_3(%arg0: i32, %arg1: i32) -> (i32, i32, i32) {
    %c0_i32 = arith.constant 0 : i32
    %c0_i32_0 = arith.constant 0 : i32
    %c0_i32_1 = arith.constant 0 : i32
    return %arg0, %c0_i32, %c0_i32_0 : i32, i32, i32
  }
  func.func @transform_4(%arg0: i32, %arg1: i32) -> (i32, i32, i32) {
    %c0_i32 = arith.constant 0 : i32
    %c0_i32_0 = arith.constant 0 : i32
    return %arg0, %c0_i32, %arg1 : i32, i32, i32
  }
  func.func @transform_5(%arg0: i32, %arg1: i32) -> (i32, i32, i32) {
    %c0_i32 = arith.constant 0 : i32
    %c0_i32_0 = arith.constant 0 : i32
    return %arg0, %c0_i32, %arg1 : i32, i32, i32
  }
}

</mosaic_0001>

<llo_original>
// kernel: tpu_custom_call.1
$region0: #{tpu_custom_call.1}
  #allocation0 [shape = 'u32[]', space=smem, size = 0x4, offset = 0x4, fixed_abs, tag = 'smem constant byte address 0x4 - core index']
  #allocation1 [shape = 'u32[144,128]{1,0:T(1,128)}', space=vmem, size = 0x12000, scoped, tag = 'internal scratch']
  #allocation2 [shape = 'f32[1]{0:T(128)S(6)}', space=smem, size = 0x200, scoped, tag = 'scoped memory for tpu_custom_call.1']
  %s0 = inlined_call_operand.<no memory space> [shape: f32[1], index: 0, kind: input, shape index: {}]
  %s1 = inlined_call_operand.vmem [shape: bf16[2,128,32], index: 1, kind: input, shape index: {}]
  %s2 = inlined_call_operand.vmem [shape: bf16[2,32,128], index: 2, kind: input, shape index: {}]
  %s3 = inlined_call_operand.vmem [shape: bf16[2,17,128], index: 3, kind: input, shape index: {}]
  %s4 = inlined_call_operand.vmem [shape: f32[2,16,128], index: 4, kind: input, shape index: {}]
  %s5 = inlined_call_operand.hbm [shape: f32[2,16,128], index: 5, kind: output, shape index: {}]
  %s6 = sld [smem:[#allocation0]]
  $region53: #{tpu_custom_call.1} parent=0
    _
  %s8 = ssub.s32 1, %s6
  %s9 = scalar_select 0, %s8, %s6
  %10 = sst [smem:[#allocation2]] %s0
  $region1: #{tpu_custom_call.1} parent=0
    #allocation3 [shape = 'u8[16384]{0}', space=vmem, size = 0x4000, scoped, tag = 'output window, operand 0']
    #allocation4 [shape = 's32[2]{0}', space=sflag, size = 0x8, scoped, tag = 'scoped memory for tpu_custom_call.1']
    %11 = vsyncpa [#allocation4], 0
    %s12 = scalar_lea.sflag [#allocation4], 1
    %13 = vsyncpa %s12, 0
    loop: start=0, step=1, limit=4
    $region2: #{tpu_custom_call.1} parent=1 // loop_pre_header
      _
    $region3: #{tpu_custom_call.1} parent=1 // loop_header
      %s15 = sphi 0, %s19
      %p16 = scmp.ge.s32.totalorder %s15, 4
      %s22 = sphi 0, %s34
      %s23 = sphi 0, %s30
      %s24 = sphi 0, %s22
      %s25 = sphi 0, %s23
      %s26 = sphi 0, %s24
      %s27 = sphi 0, %s25
      %s35 = sphi 0, %s35
      %s37 = sphi 0, %s35
      %s38 = sphi 0, %s37
      %s52 = sphi 0, %s38
      %s60 = sphi 0, %s62
      %s63 = sphi 0, %s60
      %s64 = sphi 0, %s63
      %s80 = sphi 0, %s64
      %s86 = sphi 0, %s88
      %s89 = sphi 0, %s86
      %s90 = sphi 0, %s89
      %s106 = sphi 0, %s90
      %s112 = sphi 0, %s114
      %s115 = sphi 0, %s112
      %s116 = sphi 0, %s115
      %s132 = sphi 0, %s116
      %s140 = sphi 0, %s142
      %s143 = sphi 0, %s140
      %s144 = sphi 0, %s143
      %s160 = sphi 0, %s144
      %s168 = sphi 0, %s170
      %s171 = sphi 0, %s168
      %s172 = sphi 0, %s171
      %s188 = sphi 0, %s172
    $region4: #{tpu_custom_call.1} parent=1 // loop_header_branch
      %18 = sbr.rel (%p16) target = $region8
    $region5: #{tpu_custom_call.1} parent=1 // loop_body
      %s20 = ssub.s32 %s15, 1
      %s21 = ssub.s32 %s15, 2
      %s28 = sadd.s32 1, %s23
      %p29 = scmp.ge.s32.totalorder %s28, 1
      %s30 = scalar_select %p29, 0, %s28
      %s31 = sadd.s32 1, %s22
      %s32 = scalar_select %p29, %s31, %s22
      %p33 = scmp.ge.s32.totalorder %s32, 2
      %s34 = scalar_select %p33, 0, %s32
      %s36 = sadd.s32 %s35, 1
      %p39 = scmp.eq.s32.totalorder %s15, 1
      %p40 = scmp.ne.s32.totalorder %s35, %s37
      %p41 = scmp.eq.s32.totalorder %s15, 0
      %p42 = por %p40, %p41
      %p43 = scmp.ne.s32.totalorder %s35, %s37
      %p44 = scmp.eq.s32.totalorder %s20, 1
      %p45 = por %p43, %p44
      %p46 = scmp.ne.s32.totalorder %s37, %s38
      %p47 = scmp.eq.s32.totalorder %s20, 0
      %p48 = por %p46, %p47
      %p49 = scmp.ne.s32.totalorder %s37, %s38
      %p50 = scmp.eq.s32.totalorder %s21, 1
      %p51 = por %p49, %p50
      %p53 = scmp.ne.s32.totalorder %s38, %s52
      %p54 = scmp.eq.s32.totalorder %s21, 0
      %p55 = por %p53, %p54
      %s56 = ssub.s32 %s22, %s34
      %s57 = ssub.s32 %s23, %s30
      %s58 = sor.u32 %s56, %s57
      %p59 = scmp.eq.s32.totalorder %s58, 0
      %s61 = sadd.s32 %s60, 1
      %s62 = scalar_select %p59, %s60, %s61
      %p65 = pneg %p59
      %p66 = scmp.eq.s32.totalorder %s15, 1
      %p67 = por %p65, %p66
      %p68 = scmp.ne.s32.totalorder %s60, %s63
      %p69 = scmp.eq.s32.totalorder %s15, 0
      %p70 = por %p68, %p69
      %p71 = scmp.ne.s32.totalorder %s60, %s63
      %p72 = scmp.eq.s32.totalorder %s20, 1
      %p73 = por %p71, %p72
      %p74 = scmp.ne.s32.totalorder %s63, %s64
      %p75 = scmp.eq.s32.totalorder %s20, 0
      %p76 = por %p74, %p75
      %p77 = scmp.ne.s32.totalorder %s63, %s64
      %p78 = scmp.eq.s32.totalorder %s21, 1
      %p79 = por %p77, %p78
      %p81 = scmp.ne.s32.totalorder %s64, %s80
      %p82 = scmp.eq.s32.totalorder %s21, 0
      %p83 = por %p81, %p82
      %s84 = ssub.s32 %s22, %s34
      %p85 = scmp.eq.s32.totalorder %s84, 0
      %s87 = sadd.s32 %s86, 1
      %s88 = scalar_select %p85, %s86, %s87
      %p91 = pneg %p85
      %p92 = scmp.eq.s32.totalorder %s15, 1
      %p93 = por %p91, %p92
      %p94 = scmp.ne.s32.totalorder %s86, %s89
      %p95 = scmp.eq.s32.totalorder %s15, 0
      %p96 = por %p94, %p95
      %p97 = scmp.ne.s32.totalorder %s86, %s89
      %p98 = scmp.eq.s32.totalorder %s20, 1
      %p99 = por %p97, %p98
      %p100 = scmp.ne.s32.totalorder %s89, %s90
      %p101 = scmp.eq.s32.totalorder %s20, 0
      %p102 = por %p100, %p101
      %p103 = scmp.ne.s32.totalorder %s89, %s90
      %p104 = scmp.eq.s32.totalorder %s21, 1
      %p105 = por %p103, %p104
      %p107 = scmp.ne.s32.totalorder %s90, %s106
      %p108 = scmp.eq.s32.totalorder %s21, 0
      %p109 = por %p107, %p108
      %s110 = ssub.s32 %s22, %s34
      %p111 = scmp.eq.s32.totalorder %s110, 0
      %s113 = sadd.s32 %s112, 1
      %s114 = scalar_select %p111, %s112, %s113
      %p117 = pneg %p111
      %p118 = scmp.eq.s32.totalorder %s15, 1
      %p119 = por %p117, %p118
      %p120 = scmp.ne.s32.totalorder %s112, %s115
      %p121 = scmp.eq.s32.totalorder %s15, 0
      %p122 = por %p120, %p121
      %p123 = scmp.ne.s32.totalorder %s112, %s115
      %p124 = scmp.eq.s32.totalorder %s20, 1
      %p125 = por %p123, %p124
      %p126 = scmp.ne.s32.totalorder %s115, %s116
      %p127 = scmp.eq.s32.totalorder %s20, 0
      %p128 = por %p126, %p127
      %p129 = scmp.ne.s32.totalorder %s115, %s116
      %p130 = scmp.eq.s32.totalorder %s21, 1
      %p131 = por %p129, %p130
      %p133 = scmp.ne.s32.totalorder %s116, %s132
      %p134 = scmp.eq.s32.totalorder %s21, 0
      %p135 = por %p133, %p134
      %s136 = ssub.s32 %s22, %s34
      %s137 = ssub.s32 %s23, %s30
      %s138 = sor.u32 %s136, %s137
      %p139 = scmp.eq.s32.totalorder %s138, 0
      %s141 = sadd.s32 %s140, 1
      %s142 = scalar_select %p139, %s140, %s141
      %p145 = pneg %p139
      %p146 = scmp.eq.s32.totalorder %s15, 1
      %p147 = por %p145, %p146
      %p148 = scmp.ne.s32.totalorder %s140, %s143
      %p149 = scmp.eq.s32.totalorder %s15, 0
      %p150 = por %p148, %p149
      %p151 = scmp.ne.s32.totalorder %s140, %s143
      %p152 = scmp.eq.s32.totalorder %s20, 1
      %p153 = por %p151, %p152
      %p154 = scmp.ne.s32.totalorder %s143, %s144
      %p155 = scmp.eq.s32.totalorder %s20, 0
      %p156 = por %p154, %p155
      %p157 = scmp.ne.s32.totalorder %s143, %s144
      %p158 = scmp.eq.s32.totalorder %s21, 1
      %p159 = por %p157, %p158
      %p161 = scmp.ne.s32.totalorder %s144, %s160
      %p162 = scmp.eq.s32.totalorder %s21, 0
      %p163 = por %p161, %p162
      %s164 = ssub.s32 %s22, %s34
      %s165 = ssub.s32 %s23, %s30
      %s166 = sor.u32 %s164, %s165
      %p167 = scmp.eq.s32.totalorder %s166, 0
      %s169 = sadd.s32 %s168, 1
      %s170 = scalar_select %p167, %s168, %s169
      %p173 = pneg %p167
      %p174 = scmp.eq.s32.totalorder %s15, 1
      %p175 = por %p173, %p174
      %p176 = scmp.ne.s32.totalorder %s168, %s171
      %p177 = scmp.eq.s32.totalorder %s15, 0
      %p178 = por %p176, %p177
      %p179 = scmp.ne.s32.totalorder %s168, %s171
      %p180 = scmp.eq.s32.totalorder %s20, 1
      %p181 = por %p179, %p180
      %p182 = scmp.ne.s32.totalorder %s171, %s172
      %p183 = scmp.eq.s32.totalorder %s20, 0
      %p184 = por %p182, %p183
      %p185 = scmp.ne.s32.totalorder %s171, %s172
      %p186 = scmp.eq.s32.totalorder %s21, 1
      %p187 = por %p185, %p186
      %p189 = scmp.ne.s32.totalorder %s172, %s188
      %p190 = scmp.eq.s32.totalorder %s21, 0
      %p191 = por %p189, %p190
      %p192 = scmp.le.s32.totalorder 1, %s15
      %p193 = scmp.lt.s32.totalorder %s15, 3
      %p194 = pnand %p192, %p193
      %p195 = pneg %p194
      // Predicated region
      $region9: #{tpu_custom_call.1} parent=5 // pred_check
        _
      $region10: #{tpu_custom_call.1} parent=5 // pred_check_branch
        %197 = sbr.rel (%p194) target = $region12
      $region11: #{tpu_custom_call.1} parent=5 // pred_region
        %s198 = ssub.s32 %s15, 1
        // Predicated region
        $region13: #{tpu_custom_call.1} parent=11 // pred_check
          %p199 = pneg %p48
        $region14: #{tpu_custom_call.1} parent=11 // pred_check_branch
          %201 = sbr.rel (%p199) target = $region16
        $region15: #{tpu_custom_call.1} parent=11 // pred_region
          _
        $region16: #{tpu_custom_call.1} parent=11 // pred_fallthru
          _
      $region12: #{tpu_custom_call.1} parent=5 // pred_fallthru
        _
      %p202 = scmp.lt.s32.totalorder %s15, 2
      // Predicated region
      $region17: #{tpu_custom_call.1} parent=5 // pred_check
        %p203 = pneg %p202
      $region18: #{tpu_custom_call.1} parent=5 // pred_check_branch
        %205 = sbr.rel (%p203) target = $region20
      $region19: #{tpu_custom_call.1} parent=5 // pred_region
        // Predicated region
        $region21: #{tpu_custom_call.1} parent=19 // pred_check
          %p206 = pneg %p70
        $region22: #{tpu_custom_call.1} parent=19 // pred_check_branch
          %208 = sbr.rel (%p206) target = $region24
        $region23: #{tpu_custom_call.1} parent=19 // pred_region
          %s209 = smul.u32 16, %s23
          %p210 = scmp.lt.s32.totalorder %s22, 1
          %s211 = scalar_select %p210, %s22, 1
          %p212 = scmp.lt.s32.totalorder %s209, 15
          %s213 = scalar_select %p212, %s209, 15
          %s214 = smul.addr %s211, 16
          %s215 = sadd.s32 %s213, %s214
          %s216 = smul.addr %s215, 4
          %s217 = scalar_lea.vmem %s1, %s216
          %s218 = smul.u32 16, %s23
        $region24: #{tpu_custom_call.1} parent=19 // pred_fallthru
          _
        // Predicated region
        $region25: #{tpu_custom_call.1} parent=19 // pred_check
          %p219 = pneg %p96
        $region26: #{tpu_custom_call.1} parent=19 // pred_check_branch
          %221 = sbr.rel (%p219) target = $region28
        $region27: #{tpu_custom_call.1} parent=19 // pred_region
          %p222 = scmp.lt.s32.totalorder %s22, 1
          %s223 = scalar_select %p222, %s22, 1
          %s224 = smul.addr %s223, 4
          %s225 = smul.addr %s224, 4
          %s226 = scalar_lea.vmem %s2, %s225
        $region28: #{tpu_custom_call.1} parent=19 // pred_fallthru
          _
        // Predicated region
        $region29: #{tpu_custom_call.1} parent=19 // pred_check
          %p227 = pneg %p122
        $region30: #{tpu_custom_call.1} parent=19 // pred_check_branch
          %229 = sbr.rel (%p227) target = $region32
        $region31: #{tpu_custom_call.1} parent=19 // pred_region
          %p230 = scmp.lt.s32.totalorder %s22, 1
          %s231 = scalar_select %p230, %s22, 1
          %s232 = smul.addr %s231, 3
          %s233 = smul.addr %s232, 4
          %s234 = scalar_lea.vmem %s3, %s233
        $region32: #{tpu_custom_call.1} parent=19 // pred_fallthru
          _
        // Predicated region
        $region33: #{tpu_custom_call.1} parent=19 // pred_check
          %p235 = pneg %p150
        $region34: #{tpu_custom_call.1} parent=19 // pred_check_branch
          %237 = sbr.rel (%p235) target = $region36
        $region35: #{tpu_custom_call.1} parent=19 // pred_region
          %p238 = scmp.lt.s32.totalorder %s22, 1
          %s239 = scalar_select %p238, %s22, 1
          %p240 = scmp.lt.s32.totalorder %s23, 0
          %s241 = scalar_select %p240, %s23, 0
          %s242 = smul.addr %s239, 2
          %s243 = sadd.s32 %s241, %s242
          %s244 = smul.addr %s243, 8
          %s245 = scalar_lea.vmem %s4, %s244
        $region36: #{tpu_custom_call.1} parent=19 // pred_fallthru
          _
      $region20: #{tpu_custom_call.1} parent=5 // pred_fallthru
        _
      %p246 = scmp.le.s32.totalorder 1, %s15
      %p247 = scmp.lt.s32.totalorder %s15, 3
      %p248 = pnand %p246, %p247
      %p249 = pneg %p248
      // Predicated region
      $region37: #{tpu_custom_call.1} parent=5 // pred_check
        _
      $region38: #{tpu_custom_call.1} parent=5 // pred_check_branch
        %251 = sbr.rel (%p248) target = $region40
      $region39: #{tpu_custom_call.1} parent=5 // pred_region
        %s252 = ssub.s32 %s15, 1
        %p253 = pneg %p48
        %p254 = pneg %p45
        %s255 = smul.u32 16, %s25
        %p256 = scmp.lt.s32.totalorder %s24, 1
        %s257 = scalar_select %p256, %s24, 1
        %p258 = scmp.lt.s32.totalorder %s255, 15
        %s259 = scalar_select %p258, %s255, 15
        %s260 = smul.addr %s257, 16
        %s261 = sadd.s32 %s259, %s260
        %s262 = smul.addr %s261, 4
        %s263 = scalar_lea.vmem %s1, %s262
        %p264 = pneg %p76
        %p265 = pneg %p73
        %p266 = scmp.lt.s32.totalorder %s24, 1
        %s267 = scalar_select %p266, %s24, 1
        %s268 = smul.addr %s267, 4
        %s269 = smul.addr %s268, 4
        %s270 = scalar_lea.vmem %s2, %s269
        %p271 = pneg %p102
        %p272 = pneg %p99
        %p273 = scmp.lt.s32.totalorder %s24, 1
        %s274 = scalar_select %p273, %s24, 1
        %s275 = smul.addr %s274, 3
        %s276 = smul.addr %s275, 4
        %s277 = scalar_lea.vmem %s3, %s276
        %p278 = pneg %p128
        %p279 = pneg %p125
        %p280 = scmp.lt.s32.totalorder %s24, 1
        %s281 = scalar_select %p280, %s24, 1
        %p282 = scmp.lt.s32.totalorder %s25, 0
        %s283 = scalar_select %p282, %s25, 0
        %s284 = smul.addr %s281, 2
        %s285 = sadd.s32 %s283, %s284
        %s286 = smul.addr %s285, 8
        %s287 = scalar_lea.vmem %s4, %s286
        %p288 = pneg %p156
        %p289 = pneg %p153
        %p290 = pneg %p184
        %p291 = pneg %p181
        %s292 = sand.u32 %s171, 1
        %s293 = scalar_lea.sflag [#allocation4], %s292
        %s294 = sand.u32 %s171, 1
        %s295 = smul.addr %s294, 16
        %s296 = scalar_lea.vmem [#allocation3], %s295
        %s297 = smul.u32 16, %s25
        %p298 = scmp.lt.s32.totalorder %s24, 1
        %s299 = scalar_select %p298, %s24, 1
        %p300 = scmp.lt.s32.totalorder %s297, 15
        %s301 = scalar_select %p300, %s297, 15
        %s302 = smul.addr %s299, 16
        %s303 = sadd.s32 %s301, %s302
        %s304 = smul.addr %s303, 4
        %s305 = scalar_lea.vmem %s1, %s304
        %s306 = smul.u32 16, %s25
        %p307 = scmp.lt.s32.totalorder %s24, 1
        %s308 = scalar_select %p307, %s24, 1
        %s309 = smul.addr %s308, 4
        %s310 = smul.addr %s309, 4
        %s311 = scalar_lea.vmem %s2, %s310
        %p312 = scmp.lt.s32.totalorder %s24, 1
        %s313 = scalar_select %p312, %s24, 1
        %s314 = smul.addr %s313, 3
        %s315 = smul.addr %s314, 4
        %s316 = scalar_lea.vmem %s3, %s315
        %p317 = scmp.lt.s32.totalorder %s24, 1
        %s318 = scalar_select %p317, %s24, 1
        %p319 = scmp.lt.s32.totalorder %s25, 0
        %s320 = scalar_select %p319, %s25, 0
        %s321 = smul.addr %s318, 2
        %s322 = sadd.s32 %s320, %s321
        %s323 = smul.addr %s322, 8
        %s324 = scalar_lea.vmem %s4, %s323
        %v326 = vld [vmem:[%s305] sm:$0xf]
        %v327 = vld [vmem:[%s305 + $0x4] sm:$0xf]
        %v328 = vld [vmem:[%s305 + $0x8] sm:$0xf]
        %v329 = vld [vmem:[%s305 + $0xc] sm:$0xf]
        %v330 = vld [vmem:[%s305 + $0x10] sm:$0xf]
        %v331 = vld [vmem:[%s305 + $0x14] sm:$0xf]
        %v332 = vld [vmem:[%s305 + $0x18] sm:$0xf]
        %v333 = vld [vmem:[%s305 + $0x1c] sm:$0xf]
        %v334 = vld [vmem:[%s305 + $0x20] sm:$0xf]
        %v335 = vld [vmem:[%s305 + $0x24] sm:$0xf]
        %v336 = vld [vmem:[%s305 + $0x28] sm:$0xf]
        %v337 = vld [vmem:[%s305 + $0x2c] sm:$0xf]
        %v338 = vld [vmem:[%s305 + $0x30] sm:$0xf]
        %v339 = vld [vmem:[%s305 + $0x34] sm:$0xf]
        %v340 = vld [vmem:[%s305 + $0x38] sm:$0xf]
        %v341 = vld [vmem:[%s305 + $0x3c] sm:$0xf]
        %v342 = vld [vmem:[%s311] sm:$0xf]
        %v343 = vld [vmem:[%s311 + $0x4] sm:$0xf]
        %v344 = vld [vmem:[%s311 + $0x8] sm:$0xf]
        %v345 = vld [vmem:[%s311 + $0xc] sm:$0xf]
        %v362 = vunpack.c.l.b16 %v326
        %v363 = vunpack.c.l.b16 %v327
        %v364 = vunpack.c.l.b16 %v328
        %v365 = vunpack.c.l.b16 %v329
        %v366 = vunpack.c.l.b16 %v330
        %v367 = vunpack.c.l.b16 %v331
        %v368 = vunpack.c.l.b16 %v332
        %v369 = vunpack.c.l.b16 %v333
        %v370 = vunpack.c.l.b16 %v334
        %v371 = vunpack.c.l.b16 %v335
        %v372 = vunpack.c.l.b16 %v336
        %v373 = vunpack.c.l.b16 %v337
        %v374 = vunpack.c.l.b16 %v338
        %v375 = vunpack.c.l.b16 %v339
        %v376 = vunpack.c.l.b16 %v340
        %v377 = vunpack.c.l.b16 %v341
        %v378 = vpack.c.b16 %v363, %v362
        %v379 = vpack.c.b16 %v365, %v364
        %v380 = vpack.c.b16 %v367, %v366
        %v381 = vpack.c.b16 %v369, %v368
        %v382 = vpack.c.b16 %v371, %v370
        %v383 = vpack.c.b16 %v373, %v372
        %v384 = vpack.c.b16 %v375, %v374
        %v385 = vpack.c.b16 %v377, %v376
        %v390 = vunpack.c.l.b16 %v342
        %v391 = vunpack.c.l.b16 %v343
        %v392 = vunpack.c.l.b16 %v344
        %v393 = vunpack.c.l.b16 %v345
        %v394 = vpack.c.b16 %v391, %v390
        %v395 = vpack.c.b16 %v393, %v392
        %vm398 = vcmask 261120
        %v400 = vsel %vm398, %v378, 0
        %v403 = vsel %vm398, %v379, 0
        %v406 = vsel %vm398, %v380, 0
        %v409 = vsel %vm398, %v381, 0
        %v412 = vsel %vm398, %v382, 0
        %v415 = vsel %vm398, %v383, 0
        %v418 = vsel %vm398, %v384, 0
        %v421 = vsel %vm398, %v385, 0
        %423 = vmatprep.subr.bf16.mxu0 0
        %424 = vmatpush1.bf16.msra.mxu0 %v394
        %425 = vmatprep.subr.bf16.mxu0 0
        %426 = vmatpush1.bf16.msra.mxu0 %v395
        %427 = vmatprep.subr.bf16.mxu0 0
        %428 = vmatpush1.bf16.msra.mxu0 0
        %429 = vmatprep.subr.bf16.mxu0 0
        %430 = vmatpush1.bf16.msra.mxu0 0
        %431 = vmatprep.subr.bf16.mxu0 0
        %432 = vmatpush1.bf16.msra.mxu0 0
        %433 = vmatprep.subr.bf16.mxu0 0
        %434 = vmatpush1.bf16.msra.mxu0 0
        %435 = vmatprep.subr.bf16.mxu0 0
        %436 = vmatpush1.bf16.msra.mxu0 0
        %437 = vmatprep.subr.bf16.mxu0 0
        %438 = vmatpush1.bf16.msra.mxu0 0
        %439 = vmatprep.subr.bf16.mxu0 0
        %440 = vmatpush1.bf16.msra.mxu0 0
        %441 = vmatprep.subr.bf16.mxu0 0
        %442 = vmatpush1.bf16.msra.mxu0 0
        %443 = vmatprep.subr.bf16.mxu0 0
        %444 = vmatpush1.bf16.msra.mxu0 0
        %445 = vmatprep.subr.bf16.mxu0 0
        %446 = vmatpush1.bf16.msra.mxu0 0
        %447 = vmatprep.subr.bf16.mxu0 0
        %448 = vmatpush1.bf16.msra.mxu0 0
        %449 = vmatprep.subr.bf16.mxu0 0
        %450 = vmatpush1.bf16.msra.mxu0 0
        %451 = vmatprep.subr.bf16.mxu0 0
        %452 = vmatpush1.bf16.msra.mxu0 0
        %453 = vmatprep.subr.bf16.mxu0 0
        %454 = vmatpush1.bf16.msra.mxu0 0
        %455 = vmatprep.mubr.bf16.mxu0 0
        %456 = vmatmul.mubr.bf16.gmra.mrb[0].mxu0 %v400
        %v457 = vpop.f32.mrb[0].mxu0
        %v458 = vadd.f32 0.0, %v457
        %v459 = vpop.f32.mrb[0].mxu0
        %v460 = vpop.f32.mrb[0].mxu0
        %v461 = vadd.f32 0.0, %v460
        %v462 = vpop.f32.mrb[0].mxu0
        %463 = vmatprep.mubr.bf16.mxu0 0
        %464 = vmatmul.mubr.bf16.gmra.mrb[0].mxu0 %v403
        %v465 = vpop.f32.mrb[0].mxu0
        %v466 = vadd.f32 0.0, %v465
        %v467 = vpop.f32.mrb[0].mxu0
        %v468 = vpop.f32.mrb[0].mxu0
        %v469 = vadd.f32 0.0, %v468
        %v470 = vpop.f32.mrb[0].mxu0
        %471 = vmatprep.mubr.bf16.mxu0 0
        %472 = vmatmul.mubr.bf16.gmra.mrb[0].mxu0 %v406
        %v473 = vpop.f32.mrb[0].mxu0
        %v474 = vadd.f32 0.0, %v473
        %v475 = vpop.f32.mrb[0].mxu0
        %v476 = vpop.f32.mrb[0].mxu0
        %v477 = vadd.f32 0.0, %v476
        %v478 = vpop.f32.mrb[0].mxu0
        %479 = vmatprep.mubr.bf16.mxu0 0
        %480 = vmatmul.mubr.bf16.gmra.mrb[0].mxu0 %v409
        %v481 = vpop.f32.mrb[0].mxu0
        %v482 = vadd.f32 0.0, %v481
        %v483 = vpop.f32.mrb[0].mxu0
        %v484 = vpop.f32.mrb[0].mxu0
        %v485 = vadd.f32 0.0, %v484
        %v486 = vpop.f32.mrb[0].mxu0
        %487 = vmatprep.mubr.bf16.mxu0 0
        %488 = vmatmul.mubr.bf16.gmra.mrb[0].mxu0 %v412
        %v489 = vpop.f32.mrb[0].mxu0
        %v490 = vadd.f32 0.0, %v489
        %v491 = vpop.f32.mrb[0].mxu0
        %v492 = vpop.f32.mrb[0].mxu0
        %v493 = vadd.f32 0.0, %v492
        %v494 = vpop.f32.mrb[0].mxu0
        %495 = vmatprep.mubr.bf16.mxu0 0
        %496 = vmatmul.mubr.bf16.gmra.mrb[0].mxu0 %v415
        %v497 = vpop.f32.mrb[0].mxu0
        %v498 = vadd.f32 0.0, %v497
        %v499 = vpop.f32.mrb[0].mxu0
        %v500 = vpop.f32.mrb[0].mxu0
        %v501 = vadd.f32 0.0, %v500
        %v502 = vpop.f32.mrb[0].mxu0
        %503 = vmatprep.mubr.bf16.mxu0 0
        %504 = vmatmul.mubr.bf16.gmra.mrb[0].mxu0 %v418
        %v505 = vpop.f32.mrb[0].mxu0
        %v506 = vadd.f32 0.0, %v505
        %v507 = vpop.f32.mrb[0].mxu0
        %v508 = vpop.f32.mrb[0].mxu0
        %v509 = vadd.f32 0.0, %v508
        %v510 = vpop.f32.mrb[0].mxu0
        %511 = vmatprep.mubr.bf16.mxu0 0
        %512 = vmatmul.mubr.bf16.gmra.mrb[0].mxu0 %v421
        %v513 = vpop.f32.mrb[0].mxu0
        %v514 = vadd.f32 0.0, %v513
        %v515 = vpop.f32.mrb[0].mxu0
        %v516 = vpop.f32.mrb[0].mxu0
        %v517 = vadd.f32 0.0, %v516
        %v518 = vpop.f32.mrb[0].mxu0
        %519 = vdwg.mxu0
        %520 = vmax.xlane.f32.xlu0 %v458
        %v521 = vpop.xlane.xlu0 %520
        %522 = vmax.xlane.f32.xlu0 %v461
        %v523 = vpop.xlane.xlu0 %522
        %524 = vmax.xlane.f32.xlu0 %v466
        %v525 = vpop.xlane.xlu0 %524
        %526 = vmax.xlane.f32.xlu0 %v469
        %v527 = vpop.xlane.xlu0 %526
        %528 = vmax.xlane.f32.xlu0 %v474
        %v529 = vpop.xlane.xlu0 %528
        %530 = vmax.xlane.f32.xlu0 %v477
        %v531 = vpop.xlane.xlu0 %530
        %532 = vmax.xlane.f32.xlu0 %v482
        %v533 = vpop.xlane.xlu0 %532
        %534 = vmax.xlane.f32.xlu0 %v485
        %v535 = vpop.xlane.xlu0 %534
        %536 = vmax.xlane.f32.xlu0 %v490
        %v537 = vpop.xlane.xlu0 %536
        %538 = vmax.xlane.f32.xlu0 %v493
        %v539 = vpop.xlane.xlu0 %538
        %540 = vmax.xlane.f32.xlu0 %v498
        %v541 = vpop.xlane.xlu0 %540
        %542 = vmax.xlane.f32.xlu0 %v501
        %v543 = vpop.xlane.xlu0 %542
        %544 = vmax.xlane.f32.xlu0 %v506
        %v545 = vpop.xlane.xlu0 %544
        %546 = vmax.xlane.f32.xlu0 %v509
        %v547 = vpop.xlane.xlu0 %546
        %548 = vmax.xlane.f32.xlu0 %v514
        %v549 = vpop.xlane.xlu0 %548
        %550 = vmax.xlane.f32.xlu0 %v517
        %v551 = vpop.xlane.xlu0 %550
        %v552 = vsub.f32 %v458, %v521
        %v553 = vsub.f32 %v461, %v523
        %v554 = vsub.f32 %v466, %v525
        %v555 = vsub.f32 %v469, %v527
        %v556 = vsub.f32 %v474, %v529
        %v557 = vsub.f32 %v477, %v531
        %v558 = vsub.f32 %v482, %v533
        %v559 = vsub.f32 %v485, %v535
        %v560 = vsub.f32 %v490, %v537
        %v561 = vsub.f32 %v493, %v539
        %v562 = vsub.f32 %v498, %v541
        %v563 = vsub.f32 %v501, %v543
        %v564 = vsub.f32 %v506, %v545
        %v565 = vsub.f32 %v509, %v547
        %v566 = vsub.f32 %v514, %v549
        %v567 = vsub.f32 %v517, %v551
        %v568 = vmul.f32 %v552, 1.442695
        %v569 = vpow.pop %v568
        %v570 = vmul.f32 %v553, 1.442695
        %v571 = vpow.pop %v570
        %v572 = vmul.f32 %v554, 1.442695
        %v573 = vpow.pop %v572
        %v574 = vmul.f32 %v555, 1.442695
        %v575 = vpow.pop %v574
        %v576 = vmul.f32 %v556, 1.442695
        %v577 = vpow.pop %v576
        %v578 = vmul.f32 %v557, 1.442695
        %v579 = vpow.pop %v578
        %v580 = vmul.f32 %v558, 1.442695
        %v581 = vpow.pop %v580
        %v582 = vmul.f32 %v559, 1.442695
        %v583 = vpow.pop %v582
        %v584 = vmul.f32 %v560, 1.442695
        %v585 = vpow.pop %v584
        %v586 = vmul.f32 %v561, 1.442695
        %v587 = vpow.pop %v586
        %v588 = vmul.f32 %v562, 1.442695
        %v589 = vpow.pop %v588
        %v590 = vmul.f32 %v563, 1.442695
        %v591 = vpow.pop %v590
        %v592 = vmul.f32 %v564, 1.442695
        %v593 = vpow.pop %v592
        %v594 = vmul.f32 %v565, 1.442695
        %v595 = vpow.pop %v594
        %v596 = vmul.f32 %v566, 1.442695
        %v597 = vpow.pop %v596
        %v598 = vmul.f32 %v567, 1.442695
        %v599 = vpow.pop %v598
        %v600 = vpack.c.bf16 %v571, %v569
        %v601 = vpack.c.bf16 %v575, %v573
        %v602 = vpack.c.bf16 %v579, %v577
        %v603 = vpack.c.bf16 %v583, %v581
        %v604 = vpack.c.bf16 %v587, %v585
        %v605 = vpack.c.bf16 %v591, %v589
        %v606 = vpack.c.bf16 %v595, %v593
        %v607 = vpack.c.bf16 %v599, %v597
        %v608 = vld [vmem:[%s316] sm:$0xf]
        %v609 = vld [vmem:[%s316 + $0x4] sm:$0xf]
        %v610 = vld [vmem:[%s316 + $0x8] sm:$0x1]
        %v614 = vunpack.c.l.b16 %v608
        %v615 = vunpack.c.l.b16 %v609
        %v616 = vunpack.c.l.b16 %v610
        %v617 = vpack.c.b16 %v615, %v614
        %v618 = vpack.c.b16 %v616, %v616
        %621 = vmatprep.subr.bf16.mxu0 0
        %622 = vmatpush1.bf16.xpose.msra.mxu0 %v600
        %623 = vmatprep.subr.bf16.mxu0 0
        %624 = vmatpush1.bf16.xpose.msra.mxu0 %v601
        %625 = vmatprep.subr.bf16.mxu0 0
        %626 = vmatpush1.bf16.xpose.msra.mxu0 %v602
        %627 = vmatprep.subr.bf16.mxu0 0
        %628 = vmatpush1.bf16.xpose.msra.mxu0 %v603
        %629 = vmatprep.subr.bf16.mxu0 0
        %630 = vmatpush1.bf16.xpose.msra.mxu0 %v604
        %631 = vmatprep.subr.bf16.mxu0 0
        %632 = vmatpush1.bf16.xpose.msra.mxu0 %v605
        %633 = vmatprep.subr.bf16.mxu0 0
        %634 = vmatpush1.bf16.xpose.msra.mxu0 %v606
        %635 = vmatprep.subr.bf16.mxu0 0
        %636 = vmatpush1.bf16.xpose.msra.mxu0 %v607
        %637 = vmatprep.subr.bf16.mxu0 0
        %638 = vmatpush1.bf16.xpose.msra.mxu0 0
        %639 = vmatprep.subr.bf16.mxu0 0
        %640 = vmatpush1.bf16.xpose.msra.mxu0 0
        %641 = vmatprep.subr.bf16.mxu0 0
        %642 = vmatpush1.bf16.xpose.msra.mxu0 0
        %643 = vmatprep.subr.bf16.mxu0 0
        %644 = vmatpush1.bf16.xpose.msra.mxu0 0
        %645 = vmatprep.subr.bf16.mxu0 0
        %646 = vmatpush1.bf16.xpose.msra.mxu0 0
        %647 = vmatprep.subr.bf16.mxu0 0
        %648 = vmatpush1.bf16.xpose.msra.mxu0 0
        %649 = vmatprep.subr.bf16.mxu0 0
        %650 = vmatpush1.bf16.xpose.msra.mxu0 0
        %651 = vmatprep.subr.bf16.mxu0 0
        %652 = vmatpush1.bf16.xpose.msra.mxu0 0
        %653 = vmatprep.mubr.bf16.mxu0 0
        %654 = vmatmul.mubr.bf16.gmra.mrb[0].mxu0 %v617
        %v655 = vpop.f32.mrb[0].mxu0
        %v656 = vadd.f32 0.0, %v655
        %v657 = vpop.f32.mrb[0].mxu0
        %v658 = vpop.f32.mrb[0].mxu0
        %v659 = vadd.f32 0.0, %v658
        %v660 = vpop.f32.mrb[0].mxu0
        %661 = vmatprep.mubr.bf16.mxu0 0
        %662 = vmatmul.mubr.bf16.gmra.mrb[0].mxu0 %v618
        %v663 = vpop.f32.mrb[0].mxu0
        %v664 = vadd.f32 0.0, %v663
        %v665 = vpop.f32.mrb[0].mxu0
        %v666 = vpop.f32.mrb[0].mxu0
        %v667 = vpop.f32.mrb[0].mxu0
        %668 = vdwg.mxu0
        %v669 = vrcp.pop %v664
        %s670 = sld [smem:[#allocation2]]
        %v671 = vlaneseq
        %v672 = vshrl.u32 %v671, 7
        %v673 = vsub.s32 0, %v672
        %v674 = vrot.slane %v669, %v673
        %v675 = vmul.f32 %v656, %v674
        %v676 = vmul.f32 %v659, %v674
        %v677 = vstv %s670
        %v678 = vmul.f32 %v677, %v675
        %v679 = vmul.f32 %v677, %v676
        %v680 = vld [vmem:[%s324] sm:$0xff]
        %v681 = vld [vmem:[%s324 + $0x8] sm:$0xff]
        %v682 = vadd.f32 %v678, %v680
        %v683 = vadd.f32 %v679, %v681
        %684 = vst [vmem:[%s296] sm:$0xff] %v682
        %685 = vst [vmem:[%s296 + $0x8] sm:$0xff] %v683
        %s686 = sand.u32 %s171, 1
        %s687 = scalar_lea.sflag [#allocation4], %s686
        %s688 = sand.u32 %s171, 1
        %s689 = smul.addr %s688, 16
        %s690 = scalar_lea.vmem [#allocation3], %s689
        // Predicated region
        $region41: #{tpu_custom_call.1} parent=39 // pred_check
          %p691 = pneg %p181
        $region42: #{tpu_custom_call.1} parent=39 // pred_check_branch
          %693 = sbr.rel (%p691) target = $region44
        $region43: #{tpu_custom_call.1} parent=39 // pred_region
          %s695 = ssub.s32 256, 256
          %696 = vsyncadd %s687, %s695
          %s697 = smul.addr %s24, 2
          %s698 = sadd.s32 %s25, %s697
          %s699 = smul.addr %s698, 128
          %s700 = scalar_lea.hbm %s5, %s699
          %s701 = sshll.u32 %s690, 4
          %s702 = int_to_ptr.vmem [resolvable:$true] %s701
          %707 = dma.vmem_to_hbm [thread:$0]  %s702, 256, %s700, %s687, 128, 128, 8
        $region44: #{tpu_custom_call.1} parent=39 // pred_fallthru
          _
      $region40: #{tpu_custom_call.1} parent=5 // pred_fallthru
        _
      %p708 = scmp.le.s32.totalorder 2, %s15
      // Predicated region
      $region45: #{tpu_custom_call.1} parent=5 // pred_check
        %p709 = pneg %p708
      $region46: #{tpu_custom_call.1} parent=5 // pred_check_branch
        %711 = sbr.rel (%p709) target = $region48
      $region47: #{tpu_custom_call.1} parent=5 // pred_region
        %s712 = ssub.s32 %s15, 2
        // Predicated region
        $region49: #{tpu_custom_call.1} parent=47 // pred_check
          %p713 = pneg %p187
        $region50: #{tpu_custom_call.1} parent=47 // pred_check_branch
          %715 = sbr.rel (%p713) target = $region52
        $region51: #{tpu_custom_call.1} parent=47 // pred_region
          %s716 = sand.u32 %s172, 1
          %s717 = scalar_lea.sflag [#allocation4], %s716
          %s718 = sand.u32 %s172, 1
          %s719 = smul.addr %s718, 16
          %s720 = scalar_lea.vmem [#allocation3], %s719
          %721 = dma.done %s717, 256
        $region52: #{tpu_custom_call.1} parent=47 // pred_fallthru
          _
      $region48: #{tpu_custom_call.1} parent=5 // pred_fallthru
        _
    $region6: #{tpu_custom_call.1} parent=1 // loop_footer
      %s19 = sadd.s32 1, %s15
    $region7: #{tpu_custom_call.1} parent=1 // loop_footer_branch
      %14 = sbr.rel target = $region3
    $region8: #{tpu_custom_call.1} parent=1 // loop_exit
      _
    %722 = vsyncpa [#allocation4], 1
    %s723 = scalar_lea.sflag [#allocation4], 1
    %724 = vsyncpa %s723, 1

</llo_original>
